<compile_context>
chip_gen: v7x
topology: tpu7x:2x2x1
jax: 0.10.0
libtpu: 0.0.40
codegen_flags: <defaults>
</compile_context>

<pallas_src>
import jax
import jax.numpy as jnp
import numpy as np
from jax import lax
from jax.experimental import pallas as pl
from jax.experimental.pallas import tpu as pltpu


def _round_up(n, m):
    return ((n + m - 1) // m) * m


def _tensorcores_per_chip():
    """2 on v7x (megacore grid sharding pays off), else 1. Safe fallback: 1."""
    try:
        kind = jax.devices()[0].device_kind.lower()
    except Exception:
        return 1
    return 2 if ("v7" in kind or "7x" in kind) else 1


# Largest per-step batch tile (lanes).  At 16384 lanes the f32 x tile is 1 MiB
# (2 MiB double-buffered) and the f32 h1/h2 intermediates are ~3 MiB -- far
# below the scoped-VMEM limit on every generation (incl. v5e's 16 MiB default)
# while amortizing the ~0.35 us per-grid-step pipeline overhead.
_MAX_TILE = 16384


def mlp_kernel(x_ref, w1_ref, b1_ref, w2_ref, b2_ref, w3_ref, b3_ref, o_ref):
    """Fused MLP forward for one batch tile.

    x_ref  : (TILE, in_dim)  f32   -- natural-layout batch tile
    w1_ref : (h1, in_dim)    bf16  -- PyTorch (out, in) layout
    b1_ref : (h1, 1)         f32
    w2_ref : (h2, h1)        bf16
    b2_ref : (h2, 1)         f32
    w3_ref : (h2, 1)         f32   -- final layer weight as a column
    b3_ref : (1, 1)          f32
    o_ref  : (1, TILE)       f32   -- lane-dense logits row
    """
    # bf16 cast in-kernel (VPU); no extra HBM pass over x in the wrapper.
    x_bf = x_ref[...].astype(jnp.bfloat16)                      # (TILE, in)

    # Hidden layer 1: W1 @ x^T + b1, ReLU.  The x transpose is folded into the
    # dot_general (contract both operands' last axis) -> MXU, f32 accumulation.
    h1 = lax.dot_general(w1_ref[...], x_bf,
                         dimension_numbers=(((1,), (1,)), ((), ())),
                         preferred_element_type=jnp.float32)    # (h1, TILE)
    h1 = jnp.maximum(h1 + b1_ref[...], 0.0)
    # Dropout(p) is identity in eval mode -> nothing to do.
    # TODO(synk): training-mode dropout (stochastic masking) not implemented.

    # Hidden layer 2: W2 @ h1 + b2, ReLU (bf16 MXU operands, f32 accumulation).
    h2 = jnp.dot(w2_ref[...], h1.astype(jnp.bfloat16),
                 preferred_element_type=jnp.float32)             # (h2, TILE)
    h2 = jnp.maximum(h2 + b2_ref[...], 0.0)

    # Output layer (N=1): VPU multiply + XLU sublane reduce instead of an MXU
    # matvec, producing the lane-dense (1, TILE) logits row directly.
    logits = jnp.sum(h2 * w3_ref[...], axis=0, keepdims=True) + b3_ref[...]
    o_ref[...] = logits.astype(o_ref.dtype)


def bank_marketing_nn_forward(x, params, *, tile=None):
    """Run the fused Pallas kernel.

    x      : (batch, input_dim) float32
    params : dict with PyTorch-layout weights/biases:
             w1 (h1, in), b1 (h1, 1), w2 (h2, h1), b2 (h2, 1),
             w3 (1, h2),  b3 (1, 1)
    Returns (batch, 1) float32 logits.
    """
    x = x.astype(jnp.float32)
    batch, in_dim = x.shape
    h1_dim = params["w1"].shape[0]
    h2_dim = params["w2"].shape[0]

    # --- tile / grid selection --------------------------------------------
    # Pad only to a multiple of 128 lanes (plus at most one extra 128-lane
    # block per additional grid step); padding is decoupled from tile size.
    nblk = pl.cdiv(batch, 128)                       # 128-lane blocks needed
    if tile is None:
        steps = max(pl.cdiv(nblk, _MAX_TILE // 128),           # VMEM budget
                    min(_tensorcores_per_chip(), nblk))         # v7x: 2 TCs
        tile = pl.cdiv(nblk, steps) * 128
    else:
        tile = _round_up(max(int(tile), 128), 128)   # enforce lane tiling rule
    padded = _round_up(batch, tile)
    grid = (padded // tile,)

    if padded != batch:
        x = jnp.pad(x, ((0, padded - batch), (0, 0)))  # small remainder only

    # MXU operands in bf16 (weights are tiny, cast once); everything else f32.
    w1 = params["w1"].astype(jnp.bfloat16)           # (h1, in)
    b1 = params["b1"]                                # (h1, 1)
    w2 = params["w2"].astype(jnp.bfloat16)           # (h2, h1)
    b2 = params["b2"]                                # (h2, 1)
    w3 = params["w3"].T                              # (h2, 1) column, f32
    b3 = params["b3"]                                # (1, 1)

    # Weights/biases: constant index_map -> VMEM-resident across grid steps.
    resident = lambda a: pl.BlockSpec(a.shape, lambda i: (0, 0))

    flops = 2 * padded * (in_dim * h1_dim + h1_dim * h2_dim + h2_dim)
    bytes_accessed = (x.size * 4 + (w1.size + w2.size) * 2
                      + (b1.size + b2.size + w3.size + b3.size) * 4
                      + padded * 4)

    out = pl.pallas_call(
        mlp_kernel,
        out_shape=jax.ShapeDtypeStruct((1, padded), jnp.float32),
        grid=grid,
        in_specs=[
            pl.BlockSpec((tile, in_dim), lambda i: (i, 0)),   # streamed x tiles
            resident(w1), resident(b1),
            resident(w2), resident(b2),
            resident(w3), resident(b3),
        ],
        out_specs=pl.BlockSpec((1, tile), lambda i: (0, i)),  # lane-dense logits
        compiler_params=pltpu.CompilerParams(
            dimension_semantics=("parallel",),                # shard steps (v7x)
            vmem_limit_bytes=32 << 20),
        cost_estimate=pl.CostEstimate(flops=flops, transcendentals=0,
                                      bytes_accessed=bytes_accessed),
    )(x, w1, b1, w2, b2, w3, b3)

    # (1, padded) lane-dense slab -> (batch, 1) logits.
    return out[0, :batch].reshape(batch, 1)


def init_params(key, input_dim, hidden_layers):
    """Deterministic init mimicking nn.Linear's uniform(-1/sqrt(fan_in), +).

    Weights are stored in PyTorch layout: w (out, in), b (out, 1).
    """
    dims = [input_dim] + list(hidden_layers) + [1]
    params = {}
    for i, (d_in, d_out) in enumerate(zip(dims[:-1], dims[1:]), start=1):
        key, kw, kb = jax.random.split(key, 3)
        bound = 1.0 / np.sqrt(d_in)
        params[f"w{i}"] = jax.random.uniform(
            kw, (d_out, d_in), jnp.float32, -bound, bound)
        params[f"b{i}"] = jax.random.uniform(
            kb, (d_out, 1), jnp.float32, -bound, bound)
    return params


def reference_forward(x, params):
    """Pure-JAX reference emulating the kernel's bf16 operands / f32 accum."""
    bf = lambda a: a.astype(jnp.bfloat16).astype(jnp.float32)
    h = jnp.maximum(bf(x) @ bf(params["w1"]).T + params["b1"].T, 0.0)
    h = jnp.maximum(bf(h) @ bf(params["w2"]).T + params["b2"].T, 0.0)
    return h @ params["w3"].T + params["b3"]


if __name__ == "__main__":
    key = jax.random.PRNGKey(0)

    # Small shapes consistent with the module: tabular features -> MLP.
    batch = 8
    input_dim = 16
    hidden_layers = [32, 16]

    key, kx = jax.random.split(key)
    x = jax.random.normal(kx, (batch, input_dim), dtype=jnp.float32)
    params = init_params(key, input_dim, hidden_layers)

    logits = jax.block_until_ready(bank_marketing_nn_forward(x, params))
    assert logits.shape == (batch, 1), logits.shape
    ref = reference_forward(x, params)
    np.testing.assert_allclose(np.asarray(logits), np.asarray(ref),
                               rtol=1e-2, atol=1e-2)

    # Exercise the multi-128-block batch + ragged-batch padding path.
    key, kx2 = jax.random.split(key)
    big = 1000
    x2 = jax.random.normal(kx2, (big, input_dim), dtype=jnp.float32)
    logits2 = jax.block_until_ready(bank_marketing_nn_forward(x2, params))
    assert logits2.shape == (big, 1), logits2.shape
    ref2 = reference_forward(x2, params)
    np.testing.assert_allclose(np.asarray(logits2), np.asarray(ref2),
                               rtol=1e-2, atol=1e-2)

    print("KERNEL_OK")
</pallas_src>

<mosaic_0001>
module attributes {stable_mosaic.version = 11 : i64} {
  func.func @mlp_kernel(%arg0: i32, %arg1: memref<128x16xf32, #tpu.memory_space<vmem>>, %arg2: memref<32x16xbf16, #tpu.memory_space<vmem>>, %arg3: memref<32x1xf32, #tpu.memory_space<vmem>>, %arg4: memref<16x32xbf16, #tpu.memory_space<vmem>>, %arg5: memref<16x1xf32, #tpu.memory_space<vmem>>, %arg6: memref<16x1xf32, #tpu.memory_space<vmem>>, %arg7: memref<1x1xf32, #tpu.memory_space<vmem>>, %arg8: memref<1x128xf32, #tpu.memory_space<vmem>>) attributes {dimension_semantics = [#tpu.dimension_semantics<parallel>], iteration_bounds = array<i64: 1>, scalar_prefetch = 0 : i64, scratch_operands = 0 : i64, tpu.core_type = #tpu.core_type<tc>, window_params = [{transform_indices = @transform_0, window_bounds = array<i64: 128, 16>}, {pipeline_mode = #tpu.pipeline_mode<synchronous>, transform_indices = @transform_1, window_bounds = array<i64: 32, 16>}, {pipeline_mode = #tpu.pipeline_mode<synchronous>, transform_indices = @transform_2, window_bounds = array<i64: 32, 1>}, {pipeline_mode = #tpu.pipeline_mode<synchronous>, transform_indices = @transform_3, window_bounds = array<i64: 16, 32>}, {pipeline_mode = #tpu.pipeline_mode<synchronous>, transform_indices = @transform_4, window_bounds = array<i64: 16, 1>}, {pipeline_mode = #tpu.pipeline_mode<synchronous>, transform_indices = @transform_5, window_bounds = array<i64: 16, 1>}, {pipeline_mode = #tpu.pipeline_mode<synchronous>, transform_indices = @transform_6, window_bounds = array<i64: 1, 1>}, {transform_indices = @transform_7, window_bounds = array<i64: 1, 128>}]} {
    %c0 = arith.constant 0 : index
    %c0_0 = arith.constant 0 : index
    %0 = vector.load %arg1[%c0, %c0_0] : memref<128x16xf32, #tpu.memory_space<vmem>>, vector<128x16xf32>
    %1 = arith.truncf %0 : vector<128x16xf32> to vector<128x16xbf16>
    %c0_1 = arith.constant 0 : index
    %c0_2 = arith.constant 0 : index
    %2 = vector.load %arg2[%c0_1, %c0_2] : memref<32x16xbf16, #tpu.memory_space<vmem>>, vector<32x16xbf16>
    %cst = arith.constant dense<0.000000e+00> : vector<32x128xf32>
    %3 = tpu.matmul %2, %1, %cst {dimension_numbers = #tpu.dot_dimension_numbers<[1], [1], [0], [0], [0, 0, 1, 0], [], []>} : vector<32x16xbf16>, vector<128x16xbf16>, vector<32x128xf32> -> vector<32x128xf32>
    %c0_3 = arith.constant 0 : index
    %c0_4 = arith.constant 0 : index
    %4 = vector.load %arg3[%c0_3, %c0_4] : memref<32x1xf32, #tpu.memory_space<vmem>>, vector<32x1xf32>
    %5 = vector.broadcast %4 : vector<32x1xf32> to vector<32x128xf32>
    %6 = arith.addf %3, %5 : vector<32x128xf32>
    %cst_5 = arith.constant 0.000000e+00 : f32
    %7 = vector.broadcast %cst_5 : f32 to vector<32x128xf32>
    %8 = arith.maximumf %6, %7 : vector<32x128xf32>
    %c0_6 = arith.constant 0 : index
    %c0_7 = arith.constant 0 : index
    %9 = vector.load %arg4[%c0_6, %c0_7] : memref<16x32xbf16, #tpu.memory_space<vmem>>, vector<16x32xbf16>
    %10 = arith.truncf %8 : vector<32x128xf32> to vector<32x128xbf16>
    %cst_8 = arith.constant dense<0.000000e+00> : vector<16x128xf32>
    %11 = tpu.matmul %9, %10, %cst_8 {dimension_numbers = #tpu.dot_dimension_numbers<[1], [0], [0], [1], [0, 0, 1, 1], [], []>} : vector<16x32xbf16>, vector<32x128xbf16>, vector<16x128xf32> -> vector<16x128xf32>
    %c0_9 = arith.constant 0 : index
    %c0_10 = arith.constant 0 : index
    %12 = vector.load %arg5[%c0_9, %c0_10] : memref<16x1xf32, #tpu.memory_space<vmem>>, vector<16x1xf32>
    %13 = vector.broadcast %12 : vector<16x1xf32> to vector<16x128xf32>
    %14 = arith.addf %11, %13 : vector<16x128xf32>
    %cst_11 = arith.constant 0.000000e+00 : f32
    %15 = vector.broadcast %cst_11 : f32 to vector<16x128xf32>
    %16 = arith.maximumf %14, %15 : vector<16x128xf32>
    %c0_12 = arith.constant 0 : index
    %c0_13 = arith.constant 0 : index
    %17 = vector.load %arg6[%c0_12, %c0_13] : memref<16x1xf32, #tpu.memory_space<vmem>>, vector<16x1xf32>
    %18 = vector.broadcast %17 : vector<16x1xf32> to vector<16x128xf32>
    %19 = arith.mulf %16, %18 : vector<16x128xf32>
    %cst_14 = arith.constant dense<0.000000e+00> : vector<128xf32>
    %20 = vector.multi_reduction <add>, %19, %cst_14 [0] : vector<16x128xf32> to vector<128xf32>
    %21 = vector.shape_cast %20 : vector<128xf32> to vector<1x128xf32>
    %c0_15 = arith.constant 0 : index
    %c0_16 = arith.constant 0 : index
    %22 = vector.load %arg7[%c0_15, %c0_16] : memref<1x1xf32, #tpu.memory_space<vmem>>, vector<1x1xf32>
    %23 = vector.broadcast %22 : vector<1x1xf32> to vector<1x128xf32>
    %24 = arith.addf %21, %23 : vector<1x128xf32>
    %c0_17 = arith.constant 0 : index
    %c0_18 = arith.constant 0 : index
    %25 = vector.load %arg8[%c0_17, %c0_18] : memref<1x128xf32, #tpu.memory_space<vmem>>, vector<1x128xf32>
    tpu.vector_store %arg8[%c0_17, %c0_18], %24 {strides = array<i32>} : memref<1x128xf32, #tpu.memory_space<vmem>>, vector<1x128xf32>,
    return
  }
  func.func @transform_0(%arg0: i32) -> (i32, i32) {
    %c0_i32 = arith.constant 0 : i32
    %c0_i32_0 = arith.constant 0 : i32
    return %arg0, %c0_i32 : i32, i32
  }
  func.func @transform_1(%arg0: i32) -> (i32, i32) {
    %c0_i32 = arith.constant 0 : i32
    %c0_i32_0 = arith.constant 0 : i32
    %c0_i32_1 = arith.constant 0 : i32
    return %c0_i32, %c0_i32_0 : i32, i32
  }
  func.func @transform_2(%arg0: i32) -> (i32, i32) {
    %c0_i32 = arith.constant 0 : i32
    %c0_i32_0 = arith.constant 0 : i32
    %c0_i32_1 = arith.constant 0 : i32
    return %c0_i32, %c0_i32_0 : i32, i32
  }
  func.func @transform_3(%arg0: i32) -> (i32, i32) {
    %c0_i32 = arith.constant 0 : i32
    %c0_i32_0 = arith.constant 0 : i32
    %c0_i32_1 = arith.constant 0 : i32
    return %c0_i32, %c0_i32_0 : i32, i32
  }
  func.func @transform_4(%arg0: i32) -> (i32, i32) {
    %c0_i32 = arith.constant 0 : i32
    %c0_i32_0 = arith.constant 0 : i32
    %c0_i32_1 = arith.constant 0 : i32
    return %c0_i32, %c0_i32_0 : i32, i32
  }
  func.func @transform_5(%arg0: i32) -> (i32, i32) {
    %c0_i32 = arith.constant 0 : i32
    %c0_i32_0 = arith.constant 0 : i32
    %c0_i32_1 = arith.constant 0 : i32
    return %c0_i32, %c0_i32_0 : i32, i32
  }
  func.func @transform_6(%arg0: i32) -> (i32, i32) {
    %c0_i32 = arith.constant 0 : i32
    %c0_i32_0 = arith.constant 0 : i32
    %c0_i32_1 = arith.constant 0 : i32
    return %c0_i32, %c0_i32_0 : i32, i32
  }
  func.func @transform_7(%arg0: i32) -> (i32, i32) {
    %c0_i32 = arith.constant 0 : i32
    %c0_i32_0 = arith.constant 0 : i32
    return %c0_i32, %arg0 : i32, i32
  }
}

</mosaic_0001>

<llo_original>
// kernel: tpu_custom_call.1
$region0: #{tpu_custom_call.1}
  #allocation0 [shape = 'u32[]', space=smem, size = 0x4, offset = 0x4, fixed_abs, tag = 'smem constant byte address 0x4 - core index']
  #allocation1 [shape = 'u32[144,128]{1,0:T(1,128)}', space=vmem, size = 0x12000, scoped, tag = 'internal scratch']
  #allocation2 [shape = 'f32[1,1]{1,0:T(1,128)S(1)}', space=vmem, size = 0x200, scoped, tag = 'scoped memory for tpu_custom_call.1']
  %s0 = inlined_call_operand.vmem [shape: f32[128,16], index: 0, kind: input, shape index: {}]
  %s1 = inlined_call_operand.vmem [shape: bf16[32,16], index: 1, kind: input, shape index: {}]
  %s2 = inlined_call_operand.vmem [shape: f32[32,1], index: 2, kind: input, shape index: {}]
  %s3 = inlined_call_operand.vmem [shape: bf16[16,32], index: 3, kind: input, shape index: {}]
  %s4 = inlined_call_operand.vmem [shape: f32[16,1], index: 4, kind: input, shape index: {}]
  %s5 = inlined_call_operand.vmem [shape: f32[16,1], index: 5, kind: input, shape index: {}]
  %s6 = inlined_call_operand.<no memory space> [shape: f32[1,1], index: 6, kind: input, shape index: {}]
  %s7 = inlined_call_operand.hbm [shape: f32[1,128], index: 7, kind: output, shape index: {}]
  %s8 = sld [smem:[#allocation0]]
  $region38: #{tpu_custom_call.1} parent=0
    _
  %s10 = ssub.s32 1, %s8
  %s11 = scalar_select 0, %s10, %s8
  %v12 = vstv %s6
  %13 = vst [vmem:[#allocation2] sm:$0x1] %v12
  $region1: #{tpu_custom_call.1} parent=0
    #allocation3 [shape = 'u8[512]{0}', space=vmem, size = 0x400, scoped, tag = 'output window, operand 0, single buffered']
    #allocation4 [shape = 's32[1]{0}', space=sflag, size = 0x4, scoped, tag = 'scoped memory for tpu_custom_call.1']
    %14 = vsyncpa [#allocation4], 0
    // Predicated region
    $region2: #{tpu_custom_call.1} parent=1 // pred_check
      _
    $region3: #{tpu_custom_call.1} parent=1 // pred_check_branch
      %16 = sbr.rel (0) target = $region5
    $region4: #{tpu_custom_call.1} parent=1 // pred_region
      _
    $region5: #{tpu_custom_call.1} parent=1 // pred_fallthru
      _
    // Predicated region
    $region6: #{tpu_custom_call.1} parent=1 // pred_check
      _
    $region7: #{tpu_custom_call.1} parent=1 // pred_check_branch
      %18 = sbr.rel (0) target = $region9
    $region8: #{tpu_custom_call.1} parent=1 // pred_region
      _
    $region9: #{tpu_custom_call.1} parent=1 // pred_fallthru
      _
    // Predicated region
    $region10: #{tpu_custom_call.1} parent=1 // pred_check
      _
    $region11: #{tpu_custom_call.1} parent=1 // pred_check_branch
      %20 = sbr.rel (0) target = $region13
    $region12: #{tpu_custom_call.1} parent=1 // pred_region
      _
    $region13: #{tpu_custom_call.1} parent=1 // pred_fallthru
      _
    // Predicated region
    $region14: #{tpu_custom_call.1} parent=1 // pred_check
      _
    $region15: #{tpu_custom_call.1} parent=1 // pred_check_branch
      %22 = sbr.rel (0) target = $region17
    $region16: #{tpu_custom_call.1} parent=1 // pred_region
      _
    $region17: #{tpu_custom_call.1} parent=1 // pred_fallthru
      _
    // Predicated region
    $region18: #{tpu_custom_call.1} parent=1 // pred_check
      _
    $region19: #{tpu_custom_call.1} parent=1 // pred_check_branch
      %24 = sbr.rel (0) target = $region21
    $region20: #{tpu_custom_call.1} parent=1 // pred_region
      _
    $region21: #{tpu_custom_call.1} parent=1 // pred_fallthru
      _
    // Predicated region
    $region22: #{tpu_custom_call.1} parent=1 // pred_check
      _
    $region23: #{tpu_custom_call.1} parent=1 // pred_check_branch
      %26 = sbr.rel (0) target = $region25
    $region24: #{tpu_custom_call.1} parent=1 // pred_region
      _
    $region25: #{tpu_custom_call.1} parent=1 // pred_fallthru
      _
    // Predicated region
    $region26: #{tpu_custom_call.1} parent=1 // pred_check
      _
    $region27: #{tpu_custom_call.1} parent=1 // pred_check_branch
      %28 = sbr.rel (0) target = $region29
    $region28: #{tpu_custom_call.1} parent=1 // pred_region
      _
    $region29: #{tpu_custom_call.1} parent=1 // pred_fallthru
      _
    %v30 = vld [vmem:[%s0] sm:$0xff]
    %v31 = vld [vmem:[%s0 + $0x8] sm:$0xff]
    %v32 = vld [vmem:[%s0 + $0x10] sm:$0xff]
    %v33 = vld [vmem:[%s0 + $0x18] sm:$0xff]
    %v34 = vld [vmem:[%s0 + $0x20] sm:$0xff]
    %v35 = vld [vmem:[%s0 + $0x28] sm:$0xff]
    %v36 = vld [vmem:[%s0 + $0x30] sm:$0xff]
    %v37 = vld [vmem:[%s0 + $0x38] sm:$0xff]
    %v38 = vld [vmem:[%s0 + $0x40] sm:$0xff]
    %v39 = vld [vmem:[%s0 + $0x48] sm:$0xff]
    %v40 = vld [vmem:[%s0 + $0x50] sm:$0xff]
    %v41 = vld [vmem:[%s0 + $0x58] sm:$0xff]
    %v42 = vld [vmem:[%s0 + $0x60] sm:$0xff]
    %v43 = vld [vmem:[%s0 + $0x68] sm:$0xff]
    %v44 = vld [vmem:[%s0 + $0x70] sm:$0xff]
    %v45 = vld [vmem:[%s0 + $0x78] sm:$0xff]
    %v46 = vpack.c.bf16 %v31, %v30
    %v47 = vpack.c.bf16 %v33, %v32
    %v48 = vpack.c.bf16 %v35, %v34
    %v49 = vpack.c.bf16 %v37, %v36
    %v50 = vpack.c.bf16 %v39, %v38
    %v51 = vpack.c.bf16 %v41, %v40
    %v52 = vpack.c.bf16 %v43, %v42
    %v53 = vpack.c.bf16 %v45, %v44
    %v54 = vld [vmem:[%s1] sm:$0xf]
    %v55 = vld [vmem:[%s1 + $0x4] sm:$0xf]
    %v56 = vld [vmem:[%s1 + $0x8] sm:$0xf]
    %v57 = vld [vmem:[%s1 + $0xc] sm:$0xf]
    %v58 = vld [vmem:[%s2] sm:$0xff]
    %v59 = vld [vmem:[%s2 + $0x8] sm:$0xff]
    %v60 = vld [vmem:[%s2 + $0x10] sm:$0xff]
    %v61 = vld [vmem:[%s2 + $0x18] sm:$0xff]
    %63 = vset.pattern.permute.xlu0 0
    %64 = vperm.xlu0 %63, %v58
    %v65 = vpop.permute.xlu0 %64
    %68 = vset.pattern.permute.xlu0 0
    %69 = vperm.xlu0 %68, %v59
    %v70 = vpop.permute.xlu0 %69
    %73 = vset.pattern.permute.xlu0 0
    %74 = vperm.xlu0 %73, %v60
    %v75 = vpop.permute.xlu0 %74
    %78 = vset.pattern.permute.xlu0 0
    %79 = vperm.xlu0 %78, %v61
    %v80 = vpop.permute.xlu0 %79
    %v86 = vunpack.c.l.b16 %v54
    %v87 = vunpack.c.l.b16 %v55
    %v88 = vunpack.c.l.b16 %v56
    %v89 = vunpack.c.l.b16 %v57
    %v90 = vpack.c.b16 %v87, %v86
    %v91 = vpack.c.b16 %v89, %v88
    %vm92 = vcmask 130048
    %v94 = vsel %vm92, %v90, 0
    %v97 = vsel %vm92, %v91, 0
    %v100 = vsel %vm92, %v46, 0
    %v103 = vsel %vm92, %v47, 0
    %v106 = vsel %vm92, %v48, 0
    %v109 = vsel %vm92, %v49, 0
    %v112 = vsel %vm92, %v50, 0
    %v115 = vsel %vm92, %v51, 0
    %v118 = vsel %vm92, %v52, 0
    %v121 = vsel %vm92, %v53, 0
    %123 = vmatprep.subr.bf16.mxu0 0
    %124 = vmatpush1.bf16.xpose.msra.mxu0 %v100
    %125 = vmatprep.subr.bf16.mxu0 0
    %126 = vmatpush1.bf16.xpose.msra.mxu0 %v103
    %127 = vmatprep.subr.bf16.mxu0 0
    %128 = vmatpush1.bf16.xpose.msra.mxu0 %v106
    %129 = vmatprep.subr.bf16.mxu0 0
    %130 = vmatpush1.bf16.xpose.msra.mxu0 %v109
    %131 = vmatprep.subr.bf16.mxu0 0
    %132 = vmatpush1.bf16.xpose.msra.mxu0 %v112
    %133 = vmatprep.subr.bf16.mxu0 0
    %134 = vmatpush1.bf16.xpose.msra.mxu0 %v115
    %135 = vmatprep.subr.bf16.mxu0 0
    %136 = vmatpush1.bf16.xpose.msra.mxu0 %v118
    %137 = vmatprep.subr.bf16.mxu0 0
    %138 = vmatpush1.bf16.xpose.msra.mxu0 %v121
    %139 = vmatprep.subr.bf16.mxu0 0
    %140 = vmatpush1.bf16.xpose.msra.mxu0 0
    %141 = vmatprep.subr.bf16.mxu0 0
    %142 = vmatpush1.bf16.xpose.msra.mxu0 0
    %143 = vmatprep.subr.bf16.mxu0 0
    %144 = vmatpush1.bf16.xpose.msra.mxu0 0
    %145 = vmatprep.subr.bf16.mxu0 0
    %146 = vmatpush1.bf16.xpose.msra.mxu0 0
    %147 = vmatprep.subr.bf16.mxu0 0
    %148 = vmatpush1.bf16.xpose.msra.mxu0 0
    %149 = vmatprep.subr.bf16.mxu0 0
    %150 = vmatpush1.bf16.xpose.msra.mxu0 0
    %151 = vmatprep.subr.bf16.mxu0 0
    %152 = vmatpush1.bf16.xpose.msra.mxu0 0
    %153 = vmatprep.subr.bf16.mxu0 0
    %154 = vmatpush1.bf16.xpose.msra.mxu0 0
    %155 = vmatprep.mubr.bf16.mxu0 0
    %156 = vmatmul.mubr.bf16.gmra.mrb[0].mxu0 %v94
    %v157 = vpop.f32.mrb[0].mxu0
    %v158 = vadd.f32 %v65, %v157
    %v159 = vpop.f32.mrb[0].mxu0
    %v160 = vpop.f32.mrb[0].mxu0
    %v161 = vadd.f32 %v70, %v160
    %v162 = vpop.f32.mrb[0].mxu0
    %163 = vmatprep.mubr.bf16.mxu0 0
    %164 = vmatmul.mubr.bf16.gmra.mrb[0].mxu0 %v97
    %v165 = vpop.f32.mrb[0].mxu0
    %v166 = vadd.f32 %v75, %v165
    %v167 = vpop.f32.mrb[0].mxu0
    %v168 = vpop.f32.mrb[0].mxu0
    %v169 = vadd.f32 %v80, %v168
    %v170 = vpop.f32.mrb[0].mxu0
    %171 = vdwg.mxu0
    %v172 = vmax.f32 %v158, 0.0
    %v173 = vmax.f32 %v161, 0.0
    %v174 = vmax.f32 %v166, 0.0
    %v175 = vmax.f32 %v169, 0.0
    %v176 = vld [vmem:[%s3] sm:$0xf]
    %v177 = vld [vmem:[%s3 + $0x4] sm:$0xf]
    %v178 = vpack.c.bf16 %v173, %v172
    %v179 = vpack.c.bf16 %v175, %v174
    %v180 = vld [vmem:[%s4] sm:$0xff]
    %v181 = vld [vmem:[%s4 + $0x8] sm:$0xff]
    %183 = vset.pattern.permute.xlu0 0
    %184 = vperm.xlu0 %183, %v180
    %v185 = vpop.permute.xlu0 %184
    %188 = vset.pattern.permute.xlu0 0
    %189 = vperm.xlu0 %188, %v181
    %v190 = vpop.permute.xlu0 %189
    %v194 = vunpack.c.l.b16 %v176
    %v195 = vunpack.c.l.b16 %v177
    %v196 = vpack.c.b16 %v195, %v194
    %vm197 = vcmask 261120
    %v199 = vsel %vm197, %v196, 0
    %201 = vmatprep.subr.bf16.mxu0 0
    %202 = vmatpush1.bf16.msra.mxu0 %v178
    %203 = vmatprep.subr.bf16.mxu0 0
    %204 = vmatpush1.bf16.msra.mxu0 %v179
    %205 = vmatprep.subr.bf16.mxu0 0
    %206 = vmatpush1.bf16.msra.mxu0 0
    %207 = vmatprep.subr.bf16.mxu0 0
    %208 = vmatpush1.bf16.msra.mxu0 0
    %209 = vmatprep.subr.bf16.mxu0 0
    %210 = vmatpush1.bf16.msra.mxu0 0
    %211 = vmatprep.subr.bf16.mxu0 0
    %212 = vmatpush1.bf16.msra.mxu0 0
    %213 = vmatprep.subr.bf16.mxu0 0
    %214 = vmatpush1.bf16.msra.mxu0 0
    %215 = vmatprep.subr.bf16.mxu0 0
    %216 = vmatpush1.bf16.msra.mxu0 0
    %217 = vmatprep.subr.bf16.mxu0 0
    %218 = vmatpush1.bf16.msra.mxu0 0
    %219 = vmatprep.subr.bf16.mxu0 0
    %220 = vmatpush1.bf16.msra.mxu0 0
    %221 = vmatprep.subr.bf16.mxu0 0
    %222 = vmatpush1.bf16.msra.mxu0 0
    %223 = vmatprep.subr.bf16.mxu0 0
    %224 = vmatpush1.bf16.msra.mxu0 0
    %225 = vmatprep.subr.bf16.mxu0 0
    %226 = vmatpush1.bf16.msra.mxu0 0
    %227 = vmatprep.subr.bf16.mxu0 0
    %228 = vmatpush1.bf16.msra.mxu0 0
    %229 = vmatprep.subr.bf16.mxu0 0
    %230 = vmatpush1.bf16.msra.mxu0 0
    %231 = vmatprep.subr.bf16.mxu0 0
    %232 = vmatpush1.bf16.msra.mxu0 0
    %233 = vmatprep.mubr.bf16.mxu0 0
    %234 = vmatmul.mubr.bf16.gmra.mrb[0].mxu0 %v199
    %v235 = vpop.f32.mrb[0].mxu0
    %v236 = vadd.f32 %v185, %v235
    %v237 = vpop.f32.mrb[0].mxu0
    %v238 = vpop.f32.mrb[0].mxu0
    %v239 = vadd.f32 %v190, %v238
    %v240 = vpop.f32.mrb[0].mxu0
    %241 = vdwg.mxu0
    %v242 = vmax.f32 %v236, 0.0
    %v243 = vmax.f32 %v239, 0.0
    %v244 = vld [vmem:[%s5] sm:$0xff]
    %v245 = vld [vmem:[%s5 + $0x8] sm:$0xff]
    %247 = vset.pattern.permute.xlu0 0
    %248 = vperm.xlu0 %247, %v244
    %v249 = vpop.permute.xlu0 %248
    %252 = vset.pattern.permute.xlu0 0
    %253 = vperm.xlu0 %252, %v245
    %v254 = vpop.permute.xlu0 %253
    %v256 = vmul.f32 %v242, %v249
    %v257 = vmul.f32 %v243, %v254
    %v258 = vadd.f32 %v256, %v257
    %v259 = vrot.slane %v258, 4
    %v260 = vadd.f32 %v258, %v259
    %v261 = vrot.slane %v260, 2
    %v262 = vadd.f32 %v260, %v261
    %v263 = vrot.slane %v262, 1
    %v264 = vadd.f32 %v262, %v263
    %v265 = vld [vmem:[#allocation2] sm:$0x1]
    %267 = vset.pattern.permute.xlu0 0
    %268 = vperm.xlu0 %267, %v265
    %v269 = vpop.permute.xlu0 %268
    %v271 = vlaneseq
    %v272 = vshrl.u32 %v271, 7
    %v273 = vsub.s32 0, %v272
    %v274 = vrot.slane %v269, %v273
    %v275 = vadd.f32 %v264, %v274
    %276 = vst [vmem:[#allocation3] sm:$0x1] %v275
    // Predicated region
    $region30: #{tpu_custom_call.1} parent=1 // pred_check
      _
    $region31: #{tpu_custom_call.1} parent=1 // pred_check_branch
      %278 = sbr.rel (0) target = $region33
    $region32: #{tpu_custom_call.1} parent=1 // pred_region
      %s280 = ssub.s32 16, 16
      %281 = vsyncadd [#allocation4], %s280
      %s283 = sshll.u32 [#allocation3], 4
      %s284 = int_to_ptr.vmem [resolvable:$true] %s283
      %286 = dma.vmem_to_hbm [thread:$0]  %s284, 16, %s7, [#allocation4]
    $region33: #{tpu_custom_call.1} parent=1 // pred_fallthru
      _
    // Predicated region
    $region34: #{tpu_custom_call.1} parent=1 // pred_check
      _
    $region35: #{tpu_custom_call.1} parent=1 // pred_check_branch
      %288 = sbr.rel (0) target = $region37
    $region36: #{tpu_custom_call.1} parent=1 // pred_region
      %289 = dma.done [#allocation4], 16
    $region37: #{tpu_custom_call.1} parent=1 // pred_fallthru
      _
    %290 = vsyncpa [#allocation4], 1

</llo_original>
